<compile_context>
chip_gen: v6e
topology: v6e:2x2x1
jax: 0.10.0
libtpu: 0.0.40
codegen_flags: <defaults>
</compile_context>

<pallas_src>
import math

import jax
import jax.numpy as jnp
from jax.experimental import pallas as pl
from jax.experimental.pallas import tpu as pltpu


# ----------------------------------------------------------------------------
# Faithful BasicNet.forward: the body is `pass`, so the only honest hot path is
# an identity at trace level.  Zero HBM traffic, zero kernel launches.
# ----------------------------------------------------------------------------
def basicnet_forward(x: jax.Array) -> jax.Array:
    # TODO(synk): BasicNet.forward is `pass` — nothing to lower; identity only.
    return x


# ----------------------------------------------------------------------------
# Optional Pallas identity pass-through (kept to demonstrate a correct,
# layout-legal pallas_call for subclasses to build on).
# ----------------------------------------------------------------------------
def _identity_kernel(x_ref, o_ref):
    o_ref[...] = x_ref[...]


def _sublane_quantum(dtype) -> int:
    itemsize = jnp.dtype(dtype).itemsize
    if itemsize >= 4:
        return 8
    if itemsize == 2:
        return 16
    return 32  # int8 / fp8


def _pick_lanes(total: int) -> int | None:
    """Widest multiple of 128 (<= 8192) that divides `total`, preferring >=8 rows."""
    candidates = [l for l in range(128, min(total, 8192) + 1, 128) if total % l == 0]
    if not candidates:
        return None
    wide = [l for l in candidates if total // l >= 8]
    return max(wide) if wide else max(candidates)


def _pick_tile_rows(rows: int, lanes: int, itemsize: int, sublane: int) -> int:
    """Fixed, sublane-aligned tile row count under a ~4 MiB per-tile budget."""
    tile_bytes = 4 * 1024 * 1024
    max_rows = max(1, tile_bytes // max(1, lanes * itemsize))
    if max_rows >= rows:
        return rows  # single block along rows; equal-to-full-dim is always legal
    t = (max_rows // sublane) * sublane
    return max(t, sublane)


def basicnet_forward_pallas(x: jax.Array) -> jax.Array:
    """Identity pass-through as a tiled, pipelined Pallas kernel.

    Semantically equal to `basicnet_forward(x)`; costs 2*bytes of HBM traffic,
    so prefer `basicnet_forward` unless a kernel body is actually needed.
    """
    orig_shape = x.shape
    orig_dtype = x.dtype
    total = max(1, math.prod(orig_shape))
    itemsize = jnp.dtype(orig_dtype).itemsize
    sublane = _sublane_quantum(orig_dtype)

    flat = x.reshape(total)
    lanes = _pick_lanes(total)
    padded_total = total
    if lanes is None:
        # TODO(synk): non-multiple-of-128 flat size — pad instead of shipping a
        # single (1, total) block that would blow scoped VMEM on large inputs.
        lanes = 128
        padded_total = ((total + sublane * lanes - 1) // (sublane * lanes)) * (sublane * lanes)
        flat = jnp.pad(flat, (0, padded_total - total))

    rows = padded_total // lanes
    x2d = flat.reshape(rows, lanes)

    tile_rows = _pick_tile_rows(rows, lanes, itemsize, sublane)
    grid = (pl.cdiv(rows, tile_rows),)  # ragged last block handled by Pallas

    out2d = pl.pallas_call(
        _identity_kernel,
        out_shape=jax.ShapeDtypeStruct(x2d.shape, x2d.dtype),
        grid_spec=pl.GridSpec(
            grid=grid,
            in_specs=[pl.BlockSpec((tile_rows, lanes), lambda i: (i, 0))],
            out_specs=pl.BlockSpec((tile_rows, lanes), lambda i: (i, 0)),
        ),
        compiler_params=pltpu.CompilerParams(
            # "parallel" vs "arbitrary" is measured-neutral for a bandwidth-bound
            # copy; true dual-TC sharding on v7x would need CORE_PARALLEL/core_map
            # and the copy is HBM-bound anyway, so keep the simple semantics.
            dimension_semantics=("arbitrary",),
            # ~4x tile (in+out, double-buffered) ~= 16 MiB working set; 32 MiB
            # scoped limit fits v5e/v6e/v7x without risking v7x's 64 MiB VMEM.
            vmem_limit_bytes=32 * 1024 * 1024,
        ),
    )(x2d)

    return out2d.reshape(padded_total)[:total].reshape(orig_shape).astype(orig_dtype)


if __name__ == "__main__":
    key = jax.random.PRNGKey(0)
    # Small NCHW input consistent with what a BasicNet subclass would consume.
    x = jax.random.normal(key, (2, 4, 16, 16), dtype=jnp.float32)

    # Faithful forward (zero-cost trace-level identity).
    y = basicnet_forward(x)

    # Exercise the Pallas identity path once to validate compile + run on TPU.
    y_k = basicnet_forward_pallas(x)
    jax.block_until_ready(y_k)

    assert y.shape == x.shape and y.dtype == x.dtype
    assert y_k.shape == x.shape and y_k.dtype == x.dtype
    assert bool(jnp.allclose(y, x))
    assert bool(jnp.allclose(y_k, x))

    print("KERNEL_OK")
</pallas_src>

<mosaic_0001>
module attributes {stable_mosaic.version = 11 : i64} {
  func.func @_identity_kernel(%arg0: i32, %arg1: memref<8x256xf32, #tpu.memory_space<vmem>>, %arg2: memref<8x256xf32, #tpu.memory_space<vmem>>) attributes {dimension_semantics = [#tpu.dimension_semantics<arbitrary>], iteration_bounds = array<i64: 1>, scalar_prefetch = 0 : i64, scratch_operands = 0 : i64, tpu.core_type = #tpu.core_type<tc>, window_params = [{transform_indices = @transform_0, window_bounds = array<i64: 8, 256>}, {transform_indices = @transform_1, window_bounds = array<i64: 8, 256>}]} {
    %c0 = arith.constant 0 : index
    %c0_0 = arith.constant 0 : index
    %0 = vector.load %arg1[%c0, %c0_0] : memref<8x256xf32, #tpu.memory_space<vmem>>, vector<8x256xf32>
    %c0_1 = arith.constant 0 : index
    %c0_2 = arith.constant 0 : index
    %1 = vector.load %arg2[%c0_1, %c0_2] : memref<8x256xf32, #tpu.memory_space<vmem>>, vector<8x256xf32>
    tpu.vector_store %arg2[%c0_1, %c0_2], %0 {strides = array<i32>} : memref<8x256xf32, #tpu.memory_space<vmem>>, vector<8x256xf32>,
    return
  }
  func.func @transform_0(%arg0: i32) -> (i32, i32) {
    %c0_i32 = arith.constant 0 : i32
    %c0_i32_0 = arith.constant 0 : i32
    return %arg0, %c0_i32 : i32, i32
  }
  func.func @transform_1(%arg0: i32) -> (i32, i32) {
    %c0_i32 = arith.constant 0 : i32
    %c0_i32_0 = arith.constant 0 : i32
    return %arg0, %c0_i32 : i32, i32
  }
}

</mosaic_0001>

<llo_original>
// kernel: tpu_custom_call.1
$region0: #{tpu_custom_call.1}
  #allocation0 [shape = 'u32[]', space=smem, size = 0x4, offset = 0x4, fixed_abs, tag = 'smem constant byte address 0x4 - core index']
  #allocation1 [shape = 'u32[144,128]{1,0:T(1,128)}', space=vmem, size = 0x12000, scoped, tag = 'internal scratch']
  %s0 = inlined_call_operand.hbm [shape: f32[8,256], index: 0, kind: input, shape index: {}]
  %s1 = inlined_call_operand.hbm [shape: f32[8,256], index: 1, kind: output, shape index: {}]
  %s2 = sld [smem:[#allocation0]]
  $region18: #{tpu_custom_call.1} parent=0
    _
  %s4 = ssub.s32 1, %s2
  %s5 = scalar_select 0, %s4, %s2
  $region1: #{tpu_custom_call.1} parent=0
    #allocation2 [shape = 'u8[8192]{0}', space=vmem, size = 0x2000, scoped, tag = 'input window, operand 0, single buffered']
    #allocation3 [shape = 's32[1]{0}', space=sflag, size = 0x4, scoped, tag = 'scoped memory for tpu_custom_call.1']
    #allocation4 [shape = 's32[1]{0}', space=sflag, size = 0x4, scoped, tag = 'scoped memory for tpu_custom_call.1']
    #allocation5 [shape = 'u8[8192]{0}', space=vmem, size = 0x2000, scoped, tag = 'output window, operand 0, single buffered']
    %6 = vsyncpa [#allocation3], 0
    %7 = vsyncpa [#allocation4], 0
    // Predicated region
    $region2: #{tpu_custom_call.1} parent=1 // pred_check
      _
    $region3: #{tpu_custom_call.1} parent=1 // pred_check_branch
      %9 = sbr.rel (0) target = $region5
    $region4: #{tpu_custom_call.1} parent=1 // pred_region
      %s11 = ssub.s32 256, 256
      %12 = vsyncadd [#allocation3], %s11
      %s14 = sshll.u32 [#allocation2], 4
      %s15 = int_to_ptr.vmem [resolvable:$true] %s14
      %17 = dma.hbm_to_vmem [thread:$0]  %s0, 256, %s15, [#allocation3]
    $region5: #{tpu_custom_call.1} parent=1 // pred_fallthru
      _
    // Predicated region
    $region6: #{tpu_custom_call.1} parent=1 // pred_check
      _
    $region7: #{tpu_custom_call.1} parent=1 // pred_check_branch
      %19 = sbr.rel (0) target = $region9
    $region8: #{tpu_custom_call.1} parent=1 // pred_region
      %20 = dma.done [#allocation3], 256
    $region9: #{tpu_custom_call.1} parent=1 // pred_fallthru
      _
    %v21 = vld [vmem:[#allocation2] sm:$0xff]
    %v22 = vld [vmem:[#allocation2 + $0x8] sm:$0xff]
    %23 = vst [vmem:[#allocation5] sm:$0xff] %v21
    %24 = vst [vmem:[#allocation5 + $0x8] sm:$0xff] %v22
    // Predicated region
    $region10: #{tpu_custom_call.1} parent=1 // pred_check
      _
    $region11: #{tpu_custom_call.1} parent=1 // pred_check_branch
      %26 = sbr.rel (0) target = $region13
    $region12: #{tpu_custom_call.1} parent=1 // pred_region
      %s28 = ssub.s32 256, 256
      %29 = vsyncadd [#allocation4], %s28
      %s31 = sshll.u32 [#allocation5], 4
      %s32 = int_to_ptr.vmem [resolvable:$true] %s31
      %34 = dma.vmem_to_hbm [thread:$0]  %s32, 256, %s1, [#allocation4]
    $region13: #{tpu_custom_call.1} parent=1 // pred_fallthru
      _
    // Predicated region
    $region14: #{tpu_custom_call.1} parent=1 // pred_check
      _
    $region15: #{tpu_custom_call.1} parent=1 // pred_check_branch
      %36 = sbr.rel (0) target = $region17
    $region16: #{tpu_custom_call.1} parent=1 // pred_region
      %37 = dma.done [#allocation4], 256
    $region17: #{tpu_custom_call.1} parent=1 // pred_fallthru
      _
    %38 = vsyncpa [#allocation3], 1
    %39 = vsyncpa [#allocation4], 1

</llo_original>
